<compile_context>
chip_gen: v5e
topology: v5e:2x2
jax: 0.10.0
libtpu: 0.0.40
codegen_flags: <defaults>
</compile_context>

<pallas_src>
import functools

import jax
import jax.numpy as jnp
from jax.experimental import pallas as pl
from jax.experimental.pallas import tpu as pltpu


def _distill_kl_kernel(ys_ref, yt_ref, rowkl_ref, *, inv_T, rows_total,
                       row_tile, mask_rows):
    # One (TB, C) tile of student / teacher logits; softmax axis = lanes (dim 1).
    ys = ys_ref[...].astype(jnp.float32) * inv_T
    yt = yt_ref[...].astype(jnp.float32) * inv_T

    # Max-shifted partition functions (per row).
    ys_shift = ys - jnp.max(ys, axis=1, keepdims=True)
    z_s = jnp.sum(jnp.exp(ys_shift), axis=1, keepdims=True)

    yt_shift = yt - jnp.max(yt, axis=1, keepdims=True)
    exp_t = jnp.exp(yt_shift)
    z_t = jnp.sum(exp_t, axis=1, keepdims=True)

    # Folded KL per row:
    #   sum_c p_t*(log p_t - log p_s)
    #     = [sum_c exp_t*(yt_shift - ys_shift)] / z_t + log(z_s / z_t)
    num = jnp.sum(exp_t * (yt_shift - ys_shift), axis=1, keepdims=True)
    row_kl = num / z_t + jnp.log(z_s / z_t)          # (TB, 1) f32

    if mask_rows:
        # Last grid block may overhang the batch: zero those rows so garbage
        # (undefined padding reads) never reaches the output / final sum.
        row0 = pl.program_id(0) * row_tile
        ridx = row0 + jax.lax.broadcasted_iota(jnp.int32, row_kl.shape, 0)
        row_kl = jnp.where(ridx < rows_total, row_kl, 0.0)

    rowkl_ref[...] = row_kl


def _choose_row_tile(B, C, itemsize):
    """Row tile: multiple of sublane pack, ~4 MiB per input block, capped at 4096."""
    sub = 16 if itemsize < 4 else 8
    target_bytes = 4 * 1024 * 1024
    tb = max(sub, target_bytes // max(C * itemsize, 1))
    tb = min(tb, 4096)
    tb = max((tb // sub) * sub, sub)
    # Don't tile beyond the (sublane-rounded) batch itself.
    b_round = ((B + sub - 1) // sub) * sub
    return min(tb, b_round)


def distill_kl(y_s, y_t, T: float = 4.0):
    """KLDiv(log_softmax(y_s/T), softmax(y_t/T)) * T^2 with 'batchmean' reduction."""
    assert y_s.shape == y_t.shape and y_s.ndim == 2
    B, C = y_s.shape
    itemsize = jnp.dtype(y_s.dtype).itemsize

    tb = _choose_row_tile(B, C, itemsize)
    grid = (pl.cdiv(B, tb),)
    mask_rows = (B % tb) != 0

    kernel = functools.partial(
        _distill_kl_kernel,
        inv_T=1.0 / float(T),
        rows_total=B,
        row_tile=tb,
        mask_rows=mask_rows,
    )

    row_kl = pl.pallas_call(
        kernel,
        out_shape=jax.ShapeDtypeStruct((B, 1), jnp.float32),
        grid_spec=pltpu.PrefetchScalarGridSpec(
            num_scalar_prefetch=0,
            grid=grid,
            in_specs=[
                pl.BlockSpec((tb, C), lambda i: (i, 0)),
                pl.BlockSpec((tb, C), lambda i: (i, 0)),
            ],
            out_specs=pl.BlockSpec((tb, 1), lambda i: (i, 0)),
        ),
        compiler_params=pltpu.CompilerParams(
            dimension_semantics=("parallel",),
            vmem_limit_bytes=32 * 1024 * 1024,
        ),
        cost_estimate=pl.CostEstimate(
            flops=8 * B * C,
            transcendentals=2 * B * C + 2 * B,
            bytes_accessed=2 * B * C * itemsize + B * 4,
        ),
    )(y_s, y_t)

    # Masked/partial rows are exactly zero; sum and divide by the real batch.
    return jnp.sum(row_kl) * (float(T) ** 2 / B)


def _distill_kl_ref(y_s, y_t, T: float = 4.0):
    # Pure-JAX reference (matches PyTorch DistillKL forward).
    ls = jax.nn.log_softmax(y_s.astype(jnp.float32) / T, axis=1)
    pt = jax.nn.softmax(y_t.astype(jnp.float32) / T, axis=1)
    lt = jax.nn.log_softmax(y_t.astype(jnp.float32) / T, axis=1)
    return jnp.sum(pt * (lt - ls)) / y_s.shape[0] * T ** 2


if __name__ == "__main__":
    key = jax.random.PRNGKey(0)
    T = 4.0
    k1, k2, k3, k4, k5, k6 = jax.random.split(key, 6)

    # Case 1: lane-aligned, tile == batch (no row masking).
    B, C = 8, 128
    y_s = jax.random.normal(k1, (B, C), dtype=jnp.float32)
    y_t = jax.random.normal(k2, (B, C), dtype=jnp.float32)
    loss = jax.block_until_ready(distill_kl(y_s, y_t, T))
    ref = jax.block_until_ready(_distill_kl_ref(y_s, y_t, T))
    assert jnp.allclose(loss, ref, rtol=1e-5, atol=1e-5), (loss, ref)

    # Case 2: batch not a multiple of the sublane tile (exercises in-kernel mask).
    B2, C2 = 12, 128
    y_s2 = jax.random.normal(k3, (B2, C2), dtype=jnp.float32)
    y_t2 = jax.random.normal(k4, (B2, C2), dtype=jnp.float32)
    loss2 = jax.block_until_ready(distill_kl(y_s2, y_t2, T))
    ref2 = jax.block_until_ready(_distill_kl_ref(y_s2, y_t2, T))
    assert jnp.allclose(loss2, ref2, rtol=1e-5, atol=1e-5), (loss2, ref2)

    # Case 3: bf16 logits, class count not a multiple of 128 (full-dim lane block).
    B3, C3 = 4, 100
    y_s3 = jax.random.normal(k5, (B3, C3), dtype=jnp.bfloat16)
    y_t3 = jax.random.normal(k6, (B3, C3), dtype=jnp.bfloat16)
    loss3 = jax.block_until_ready(distill_kl(y_s3, y_t3, T))
    ref3 = jax.block_until_ready(_distill_kl_ref(y_s3, y_t3, T))
    assert jnp.allclose(loss3, ref3, rtol=1e-4, atol=1e-4), (loss3, ref3)

    print("KERNEL_OK")
</pallas_src>

<mosaic_0001>
module attributes {stable_mosaic.version = 11 : i64} {
  func.func @_distill_kl_kernel(%arg0: i32, %arg1: memref<8x128xf32, #tpu.memory_space<vmem>>, %arg2: memref<8x128xf32, #tpu.memory_space<vmem>>, %arg3: memref<8x1xf32, #tpu.memory_space<vmem>>) attributes {dimension_semantics = [#tpu.dimension_semantics<parallel>], iteration_bounds = array<i64: 1>, scalar_prefetch = 0 : i64, scratch_operands = 0 : i64, tpu.core_type = #tpu.core_type<tc>, window_params = [{transform_indices = @transform_0, window_bounds = array<i64: 8, 128>}, {transform_indices = @transform_1, window_bounds = array<i64: 8, 128>}, {transform_indices = @transform_2, window_bounds = array<i64: 8, 1>}]} {
    %c0 = arith.constant 0 : index
    %c0_0 = arith.constant 0 : index
    %0 = vector.load %arg1[%c0, %c0_0] : memref<8x128xf32, #tpu.memory_space<vmem>>, vector<8x128xf32>
    %cst = arith.constant 2.500000e-01 : f32
    %1 = vector.broadcast %cst : f32 to vector<8x128xf32>
    %2 = arith.mulf %0, %1 : vector<8x128xf32>
    %c0_1 = arith.constant 0 : index
    %c0_2 = arith.constant 0 : index
    %3 = vector.load %arg2[%c0_1, %c0_2] : memref<8x128xf32, #tpu.memory_space<vmem>>, vector<8x128xf32>
    %cst_3 = arith.constant 2.500000e-01 : f32
    %4 = vector.broadcast %cst_3 : f32 to vector<8x128xf32>
    %5 = arith.mulf %3, %4 : vector<8x128xf32>
    %cst_4 = arith.constant dense<0xFF800000> : vector<8xf32>
    %6 = vector.multi_reduction <maximumf>, %2, %cst_4 [1] : vector<8x128xf32> to vector<8xf32>
    %7 = vector.shape_cast %6 : vector<8xf32> to vector<8x1xf32>
    %8 = vector.broadcast %7 : vector<8x1xf32> to vector<8x128xf32>
    %9 = arith.subf %2, %8 : vector<8x128xf32>
    %10 = math.exp %9 : vector<8x128xf32>
    %cst_5 = arith.constant dense<0.000000e+00> : vector<8xf32>
    %11 = vector.multi_reduction <add>, %10, %cst_5 [1] : vector<8x128xf32> to vector<8xf32>
    %12 = vector.shape_cast %11 : vector<8xf32> to vector<8x1xf32>
    %cst_6 = arith.constant dense<0xFF800000> : vector<8xf32>
    %13 = vector.multi_reduction <maximumf>, %5, %cst_6 [1] : vector<8x128xf32> to vector<8xf32>
    %14 = vector.shape_cast %13 : vector<8xf32> to vector<8x1xf32>
    %15 = vector.broadcast %14 : vector<8x1xf32> to vector<8x128xf32>
    %16 = arith.subf %5, %15 : vector<8x128xf32>
    %17 = math.exp %16 : vector<8x128xf32>
    %cst_7 = arith.constant dense<0.000000e+00> : vector<8xf32>
    %18 = vector.multi_reduction <add>, %17, %cst_7 [1] : vector<8x128xf32> to vector<8xf32>
    %19 = vector.shape_cast %18 : vector<8xf32> to vector<8x1xf32>
    %20 = arith.subf %16, %9 : vector<8x128xf32>
    %21 = arith.mulf %17, %20 : vector<8x128xf32>
    %cst_8 = arith.constant dense<0.000000e+00> : vector<8xf32>
    %22 = vector.multi_reduction <add>, %21, %cst_8 [1] : vector<8x128xf32> to vector<8xf32>
    %23 = vector.shape_cast %22 : vector<8xf32> to vector<8x1xf32>
    %24 = arith.divf %23, %19 : vector<8x1xf32>
    %25 = arith.divf %12, %19 : vector<8x1xf32>
    %26 = math.log %25 : vector<8x1xf32>
    %27 = arith.addf %24, %26 : vector<8x1xf32>
    %c0_9 = arith.constant 0 : index
    %c0_10 = arith.constant 0 : index
    %28 = vector.load %arg3[%c0_9, %c0_10] : memref<8x1xf32, #tpu.memory_space<vmem>>, vector<8x1xf32>
    tpu.vector_store %arg3[%c0_9, %c0_10], %27 {strides = array<i32>} : memref<8x1xf32, #tpu.memory_space<vmem>>, vector<8x1xf32>,
    return
  }
  func.func @transform_0(%arg0: i32) -> (i32, i32) {
    %c0_i32 = arith.constant 0 : i32
    %c0_i32_0 = arith.constant 0 : i32
    return %arg0, %c0_i32 : i32, i32
  }
  func.func @transform_1(%arg0: i32) -> (i32, i32) {
    %c0_i32 = arith.constant 0 : i32
    %c0_i32_0 = arith.constant 0 : i32
    return %arg0, %c0_i32 : i32, i32
  }
  func.func @transform_2(%arg0: i32) -> (i32, i32) {
    %c0_i32 = arith.constant 0 : i32
    %c0_i32_0 = arith.constant 0 : i32
    return %arg0, %c0_i32 : i32, i32
  }
}

</mosaic_0001>

<llo_original>
// kernel: tpu_custom_call.1
$region0: #{tpu_custom_call.1}
  #allocation0 [shape = 'u32[]', space=smem, size = 0x4, offset = 0x4, fixed_abs, tag = 'smem constant byte address 0x4 - core index']
  #allocation1 [shape = 'u32[72,128]{1,0:T(1,128)}', space=vmem, size = 0x9000, scoped, tag = 'internal scratch']
  %s0 = inlined_call_operand.hbm [shape: f32[8,128], index: 0, kind: input, shape index: {}]
  %s1 = inlined_call_operand.hbm [shape: f32[8,128], index: 1, kind: input, shape index: {}]
  %s2 = inlined_call_operand.vmem [shape: f32[8,1], index: 2, kind: output, shape index: {}]
  %s3 = sld [smem:[#allocation0]]
  $region26: #{tpu_custom_call.1} parent=0
    _
  %s5 = ssub.s32 1, %s3
  %s6 = scalar_select 0, %s5, %s3
  $region1: #{tpu_custom_call.1} parent=0
    #allocation2 [shape = 'u8[4096]{0}', space=vmem, size = 0x1000, scoped, tag = 'input window, operand 0, single buffered']
    #allocation3 [shape = 's32[1]{0}', space=sflag, size = 0x4, scoped, tag = 'scoped memory for tpu_custom_call.1']
    #allocation4 [shape = 'u8[4096]{0}', space=vmem, size = 0x1000, scoped, tag = 'input window, operand 1, single buffered']
    #allocation5 [shape = 's32[1]{0}', space=sflag, size = 0x4, scoped, tag = 'scoped memory for tpu_custom_call.1']
    %7 = vsyncpa [#allocation3], 0
    %8 = vsyncpa [#allocation5], 0
    // Predicated region
    $region2: #{tpu_custom_call.1} parent=1 // pred_check
      _
    $region3: #{tpu_custom_call.1} parent=1 // pred_check_branch
      %10 = sbr.rel (0) target = $region5
    $region4: #{tpu_custom_call.1} parent=1 // pred_region
      %12 = vsyncadd [#allocation3], 0
      %s14 = sshll.u32 %s0, 4
      %s15 = int_to_ptr.hbm [resolvable:$true] %s14
      %s16 = sshll.u32 [#allocation2], 4
      %s17 = int_to_ptr.vmem [resolvable:$true] %s16
      %19 = dma.hbm_to_vmem [thread:$0]  %s15, 128, %s17, [#allocation3]
    $region5: #{tpu_custom_call.1} parent=1 // pred_fallthru
      _
    // Predicated region
    $region6: #{tpu_custom_call.1} parent=1 // pred_check
      _
    $region7: #{tpu_custom_call.1} parent=1 // pred_check_branch
      %21 = sbr.rel (0) target = $region9
    $region8: #{tpu_custom_call.1} parent=1 // pred_region
      %23 = vsyncadd [#allocation5], 0
      %s25 = sshll.u32 %s1, 4
      %s26 = int_to_ptr.hbm [resolvable:$true] %s25
      %s27 = sshll.u32 [#allocation4], 4
      %s28 = int_to_ptr.vmem [resolvable:$true] %s27
      %30 = dma.hbm_to_vmem [thread:$0]  %s26, 128, %s28, [#allocation5]
    $region9: #{tpu_custom_call.1} parent=1 // pred_fallthru
      _
    // Predicated region
    $region10: #{tpu_custom_call.1} parent=1 // pred_check
      _
    $region11: #{tpu_custom_call.1} parent=1 // pred_check_branch
      %32 = sbr.rel (0) target = $region13
    $region12: #{tpu_custom_call.1} parent=1 // pred_region
      %34 = dma.done [#allocation3], 128
    $region13: #{tpu_custom_call.1} parent=1 // pred_fallthru
      _
    // Predicated region
    $region14: #{tpu_custom_call.1} parent=1 // pred_check
      _
    $region15: #{tpu_custom_call.1} parent=1 // pred_check_branch
      %36 = sbr.rel (0) target = $region17
    $region16: #{tpu_custom_call.1} parent=1 // pred_region
      %38 = dma.done [#allocation5], 128
    $region17: #{tpu_custom_call.1} parent=1 // pred_fallthru
      _
    %v39 = vld [vmem:[#allocation2] sm:$0xff]
    %v40 = vmul.f32 %v39, 0.25
    %v41 = vld [vmem:[#allocation4] sm:$0xff]
    %v42 = vmul.f32 %v41, 0.25
    %43 = vmax.xlane.f32.xlu0 %v40
    %v44 = vpop.xlane.xlu0 %43
    %v45 = vsub.f32 %v40, %v44
    %v46 = vmul.f32 %v45, 1.442695
    %v47 = vpow.pop %v46
    %48 = vadd.xlane.f32.xlu0 %v47
    %v49 = vpop.xlane.xlu0 %48
    %50 = vmax.xlane.f32.xlu0 %v42
    %v51 = vpop.xlane.xlu0 %50
    %v52 = vsub.f32 %v42, %v51
    %v53 = vmul.f32 %v52, 1.442695
    %v54 = vpow.pop %v53
    %55 = vadd.xlane.f32.xlu0 %v54
    %v56 = vpop.xlane.xlu0 %55
    %v57 = vsub.f32 %v52, %v45
    %v58 = vmul.f32 %v54, %v57
    %59 = vadd.xlane.f32.xlu0 %v58
    %v60 = vpop.xlane.xlu0 %59
    %v61 = vrcp.pop %v56
    %v62 = vmul.f32 %v56, %v61
    %v63 = vsub.f32 1.0, %v62
    %v64 = vmul.f32 %v61, %v63
    %v65 = vadd.f32 %v61, %v64
    %vm66 = vweird.f32 %v56
    %vm67 = vweird.f32 %v61
    %vm68 = vmor %vm66, %vm67
    %v69 = vsel %vm68, %v61, %v65
    %v70 = vand.u32 2147483647, %v56
    %vm71 = vcmp.eq.f32.partialorder %v70, 8.507059e+37
    %v72 = vand.u32 %v56, 2147483648
    %v73 = vor.u32 1.1754944e-38, %v72
    %v74 = vsel %vm71, %v73, %v69
    %v75 = vmul.f32 %v60, %v74
    %v76 = vmul.f32 %v49, %v74
    %v77 = vlog2.pop %v76
    %v78 = vmul.f32 %v77, 0.6931472
    %v79 = vadd.f32 %v75, %v78
    %vm80 = vcmask 7168
    %81 = vst.msk [vmem:[%s2] sm:$0xff] %vm80, %v79
    // Predicated region
    $region18: #{tpu_custom_call.1} parent=1 // pred_check
      _
    $region19: #{tpu_custom_call.1} parent=1 // pred_check_branch
      %83 = sbr.rel (0) target = $region21
    $region20: #{tpu_custom_call.1} parent=1 // pred_region
      _
    $region21: #{tpu_custom_call.1} parent=1 // pred_fallthru
      _
    // Predicated region
    $region22: #{tpu_custom_call.1} parent=1 // pred_check
      _
    $region23: #{tpu_custom_call.1} parent=1 // pred_check_branch
      %85 = sbr.rel (0) target = $region25
    $region24: #{tpu_custom_call.1} parent=1 // pred_region
      _
    $region25: #{tpu_custom_call.1} parent=1 // pred_fallthru
      _
    %86 = vsyncpa [#allocation3], 1
    %87 = vsyncpa [#allocation5], 1

</llo_original>
